<compile_context>
chip_gen: v7x
topology: tpu7x:2x2x1
jax: 0.10.0
libtpu: 0.0.40
codegen_flags: <defaults>
</compile_context>

<pallas_src>
import jax
import jax.numpy as jnp
from jax.experimental import pallas as pl
from jax.experimental.pallas import tpu as pltpu

INSTRUCTIONS = ['fadd', 'fsub', 'fmul', 'fdiv', 'fmod', 'mod', 'add', 'sub',
                'mul', 'sdiv', 'udiv', 'and', 'or', 'xor', 'icmp', 'br',
                'sext', 'zext', 'shl', 'lshr', 'ashr', 'not', 'load', 'store']

TILE_B = 512          # default batch tile (rows); tunable, clamped per batch


def _round_up(x, m):
    return (x + m - 1) // m * m


def _choose_tile_b(batch, requested=TILE_B):
    """Pick a batch tile: big (amortize per-step overhead), but keep >= 2 grid
    steps when each step still gets >= 128 rows (v7x has 2 TensorCores)."""
    b8 = _round_up(max(batch, 1), 8)
    tile = min(requested, b8)
    if -(-b8 // tile) < 2 and b8 >= 256:
        tile = _round_up(-(-b8 // 2), 8)
    return tile


def placement_fwd_kernel(obs_ref, amask_ref, w1_ref, w2_ref, w3_ref,
                         b1_ref, b2_ref, b3_ref, out_ref):
    """One batch tile of the 2-hidden-layer tanh MLP + action-mask add.

    obs_ref   : [TILE, d_obs] f32   (unpadded features; cast to bf16 in-kernel)
    amask_ref : [TILE, A]     f32   (action mask, unpadded)
    w1_ref    : [d_obs, H]    bf16  (VMEM-resident across grid steps)
    w2_ref    : [H, H]        bf16
    w3_ref    : [H, A]        bf16
    b1/b2_ref : [1, H]        f32
    b3_ref    : [1, A]        f32
    out_ref   : [TILE, A]     f32
    """
    obs = obs_ref[...].astype(jnp.bfloat16)           # free VPU cast under DMA
    h1 = jnp.tanh(
        jnp.dot(obs, w1_ref[...], preferred_element_type=jnp.float32)
        + b1_ref[...])
    h2 = jnp.tanh(
        jnp.dot(h1.astype(jnp.bfloat16), w2_ref[...],
                preferred_element_type=jnp.float32)
        + b2_ref[...])
    logits = (jnp.dot(h2.astype(jnp.bfloat16), w3_ref[...],
                      preferred_element_type=jnp.float32)
              + b3_ref[...])
    # Faithful to the module: max(log(mask), -1000).  log(0) -> -inf -> clamped
    # to -1000; exact for soft masks too.  EUP transcendental slot is idle here.
    mask = jnp.maximum(jnp.log(amask_ref[...]), -1000.0)
    out_ref[...] = (logits + mask).astype(out_ref.dtype)


def prepare_params(params):
    """Cast weights to bf16 (MXU operands); keep biases f32 for the f32 adds."""
    return {
        "w1": params["w1"].astype(jnp.bfloat16),                  # [d_obs, H]
        "w2": params["w2"].astype(jnp.bfloat16),                  # [H, H]
        "w3": params["w3"].astype(jnp.bfloat16),                  # [H, A]
        "b1": params["b1"].reshape(1, -1).astype(jnp.float32),    # [1, H]
        "b2": params["b2"].reshape(1, -1).astype(jnp.float32),    # [1, H]
        "b3": params["b3"].reshape(1, -1).astype(jnp.float32),    # [1, A]
    }


def placement_model_forward(obs, action_mask, prepped, tile_b=TILE_B):
    """obs: [B, d_obs] f32, action_mask: [B, A] f32 (0/1). Returns [B, A] f32."""
    B, d_obs = obs.shape
    A = action_mask.shape[1]
    H = prepped["w1"].shape[1]

    tile = _choose_tile_b(B, tile_b)
    B_pad = _round_up(B, tile)
    if B_pad != B:                       # only pad rows when strictly needed
        obs = jnp.zeros((B_pad, d_obs), obs.dtype).at[:B].set(obs)
        action_mask = jnp.ones((B_pad, A), action_mask.dtype).at[:B].set(action_mask)
    nb = B_pad // tile

    weight_bytes = (prepped["w1"].size + prepped["w2"].size
                    + prepped["w3"].size) * 2 + (2 * H + A) * 4
    cost = pl.CostEstimate(
        flops=2 * B_pad * (d_obs * H + H * H + H * A),
        transcendentals=B_pad * (2 * H + A),
        bytes_accessed=B_pad * (d_obs * 4 + A * 4 + A * 4) + weight_bytes,
    )

    out = pl.pallas_call(
        placement_fwd_kernel,
        out_shape=jax.ShapeDtypeStruct((B_pad, A), jnp.float32),
        grid=(nb,),
        in_specs=[
            pl.BlockSpec((tile, d_obs), lambda i: (i, 0)),   # obs: tiled on batch
            pl.BlockSpec((tile, A), lambda i: (i, 0)),       # action mask
            pl.BlockSpec((d_obs, H), lambda i: (0, 0)),      # w1: VMEM-resident
            pl.BlockSpec((H, H), lambda i: (0, 0)),          # w2
            pl.BlockSpec((H, A), lambda i: (0, 0)),          # w3
            pl.BlockSpec((1, H), lambda i: (0, 0)),          # b1
            pl.BlockSpec((1, H), lambda i: (0, 0)),          # b2
            pl.BlockSpec((1, A), lambda i: (0, 0)),          # b3
        ],
        out_specs=pl.BlockSpec((tile, A), lambda i: (i, 0)),
        compiler_params=pltpu.CompilerParams(
            dimension_semantics=("parallel",)),              # split batch over TCs
        cost_estimate=cost,
    )(obs, action_mask, prepped["w1"], prepped["w2"], prepped["w3"],
      prepped["b1"], prepped["b2"], prepped["b3"])
    return out[:B] if B_pad != B else out


def make_params(key, d_obs, hidden, num_outputs):
    """Deterministic synthetic init (TorchFC: two hidden layers + logits layer)."""
    k1, k2, k3 = jax.random.split(key, 3)
    s1 = 1.0 / jnp.sqrt(jnp.float32(d_obs))
    s2 = 1.0 / jnp.sqrt(jnp.float32(hidden))
    return {
        "w1": jax.random.normal(k1, (d_obs, hidden), jnp.float32) * s1,
        "b1": jnp.zeros((1, hidden), jnp.float32),
        "w2": jax.random.normal(k2, (hidden, hidden), jnp.float32) * s2,
        "b2": jnp.zeros((1, hidden), jnp.float32),
        "w3": jax.random.normal(k3, (hidden, num_outputs), jnp.float32) * s2,
        "b3": jnp.zeros((1, num_outputs), jnp.float32),
    }


def reference_forward(obs, action_mask, p):
    h1 = jnp.tanh(obs @ p["w1"] + p["b1"])
    h2 = jnp.tanh(h1 @ p["w2"] + p["b2"])
    logits = h2 @ p["w3"] + p["b3"]
    mask = jnp.maximum(jnp.log(action_mask), -1000.0)
    return logits + mask


# TODO(synk): value_function() (the TorchFC value head) is a separate output
# branch of the module and is not implemented here; only the policy forward is.

if __name__ == "__main__":
    # Small config consistent with the module:
    #   rows=1, cols=1, cgra_state=True, with_features=False
    #   -> true_obs_space = (1+1)*(1+1)*len(Instructions) = 96
    rows, cols = 1, 1
    d_obs = (rows + 1) * (cols + 1) * len(INSTRUCTIONS)   # 96
    hidden = 128                                          # fcnet hidden size
    num_outputs = 16                                      # action space size
    batch = 256                                           # -> 2 grid steps of 128

    key = jax.random.PRNGKey(0)
    k_obs, k_mask, k_params = jax.random.split(key, 3)

    obs = jax.random.uniform(k_obs, (batch, d_obs), jnp.float32,
                             minval=-1.0, maxval=1.0)
    # 0/1 action mask; guarantee at least one legal action per row
    action_mask = (jax.random.uniform(k_mask, (batch, num_outputs)) > 0.5
                   ).astype(jnp.float32)
    action_mask = action_mask.at[:, 0].set(1.0)

    params = make_params(k_params, d_obs, hidden, num_outputs)
    prepped = prepare_params(params)

    out = placement_model_forward(obs, action_mask, prepped)
    out = jax.block_until_ready(out)

    ref = reference_forward(obs, action_mask, params)
    assert out.shape == (batch, num_outputs)
    # bf16 weights with f32 accumulation -> small absolute deviation from the
    # f32 reference.  atol-only so masked (~-1000) entries are validated too.
    assert jnp.allclose(out, ref, atol=5e-2, rtol=0.0), (
        float(jnp.max(jnp.abs(out - ref))))

    print("KERNEL_OK")
</pallas_src>

<mosaic_0001>
module attributes {stable_mosaic.version = 11 : i64} {
  func.func @placement_fwd_kernel(%arg0: i32, %arg1: memref<128x96xf32, #tpu.memory_space<vmem>>, %arg2: memref<128x16xf32, #tpu.memory_space<vmem>>, %arg3: memref<96x128xbf16, #tpu.memory_space<vmem>>, %arg4: memref<128x128xbf16, #tpu.memory_space<vmem>>, %arg5: memref<128x16xbf16, #tpu.memory_space<vmem>>, %arg6: memref<1x128xf32, #tpu.memory_space<vmem>>, %arg7: memref<1x128xf32, #tpu.memory_space<vmem>>, %arg8: memref<1x16xf32, #tpu.memory_space<vmem>>, %arg9: memref<128x16xf32, #tpu.memory_space<vmem>>) attributes {dimension_semantics = [#tpu.dimension_semantics<parallel>], iteration_bounds = array<i64: 2>, scalar_prefetch = 0 : i64, scratch_operands = 0 : i64, tpu.core_type = #tpu.core_type<tc>, window_params = [{transform_indices = @transform_0, window_bounds = array<i64: 128, 96>}, {transform_indices = @transform_1, window_bounds = array<i64: 128, 16>}, {pipeline_mode = #tpu.pipeline_mode<synchronous>, transform_indices = @transform_2, window_bounds = array<i64: 96, 128>}, {pipeline_mode = #tpu.pipeline_mode<synchronous>, transform_indices = @transform_3, window_bounds = array<i64: 128, 128>}, {pipeline_mode = #tpu.pipeline_mode<synchronous>, transform_indices = @transform_4, window_bounds = array<i64: 128, 16>}, {pipeline_mode = #tpu.pipeline_mode<synchronous>, transform_indices = @transform_5, window_bounds = array<i64: 1, 128>}, {pipeline_mode = #tpu.pipeline_mode<synchronous>, transform_indices = @transform_6, window_bounds = array<i64: 1, 128>}, {pipeline_mode = #tpu.pipeline_mode<synchronous>, transform_indices = @transform_7, window_bounds = array<i64: 1, 16>}, {transform_indices = @transform_8, window_bounds = array<i64: 128, 16>}]} {
    %c0 = arith.constant 0 : index
    %c0_0 = arith.constant 0 : index
    %0 = vector.load %arg1[%c0, %c0_0] : memref<128x96xf32, #tpu.memory_space<vmem>>, vector<128x96xf32>
    %1 = arith.truncf %0 : vector<128x96xf32> to vector<128x96xbf16>
    %c0_1 = arith.constant 0 : index
    %c0_2 = arith.constant 0 : index
    %2 = vector.load %arg3[%c0_1, %c0_2] : memref<96x128xbf16, #tpu.memory_space<vmem>>, vector<96x128xbf16>
    %cst = arith.constant dense<0.000000e+00> : vector<128x128xf32>
    %3 = tpu.matmul %1, %2, %cst {dimension_numbers = #tpu.dot_dimension_numbers<[1], [0], [0], [1], [0, 0, 1, 1], [], []>} : vector<128x96xbf16>, vector<96x128xbf16>, vector<128x128xf32> -> vector<128x128xf32>
    %c0_3 = arith.constant 0 : index
    %c0_4 = arith.constant 0 : index
    %4 = vector.load %arg6[%c0_3, %c0_4] : memref<1x128xf32, #tpu.memory_space<vmem>>, vector<1x128xf32>
    %5 = vector.broadcast %4 : vector<1x128xf32> to vector<128x128xf32>
    %6 = arith.addf %3, %5 : vector<128x128xf32>
    %7 = math.tanh %6 : vector<128x128xf32>
    %8 = arith.truncf %7 : vector<128x128xf32> to vector<128x128xbf16>
    %c0_5 = arith.constant 0 : index
    %c0_6 = arith.constant 0 : index
    %9 = vector.load %arg4[%c0_5, %c0_6] : memref<128x128xbf16, #tpu.memory_space<vmem>>, vector<128x128xbf16>
    %cst_7 = arith.constant dense<0.000000e+00> : vector<128x128xf32>
    %10 = tpu.matmul %8, %9, %cst_7 {dimension_numbers = #tpu.dot_dimension_numbers<[1], [0], [0], [1], [0, 0, 1, 1], [], []>} : vector<128x128xbf16>, vector<128x128xbf16>, vector<128x128xf32> -> vector<128x128xf32>
    %c0_8 = arith.constant 0 : index
    %c0_9 = arith.constant 0 : index
    %11 = vector.load %arg7[%c0_8, %c0_9] : memref<1x128xf32, #tpu.memory_space<vmem>>, vector<1x128xf32>
    %12 = vector.broadcast %11 : vector<1x128xf32> to vector<128x128xf32>
    %13 = arith.addf %10, %12 : vector<128x128xf32>
    %14 = math.tanh %13 : vector<128x128xf32>
    %15 = arith.truncf %14 : vector<128x128xf32> to vector<128x128xbf16>
    %c0_10 = arith.constant 0 : index
    %c0_11 = arith.constant 0 : index
    %16 = vector.load %arg5[%c0_10, %c0_11] : memref<128x16xbf16, #tpu.memory_space<vmem>>, vector<128x16xbf16>
    %cst_12 = arith.constant dense<0.000000e+00> : vector<128x16xf32>
    %17 = tpu.matmul %15, %16, %cst_12 {dimension_numbers = #tpu.dot_dimension_numbers<[1], [0], [0], [1], [0, 0, 1, 1], [], []>} : vector<128x128xbf16>, vector<128x16xbf16>, vector<128x16xf32> -> vector<128x16xf32>
    %c0_13 = arith.constant 0 : index
    %c0_14 = arith.constant 0 : index
    %18 = vector.load %arg8[%c0_13, %c0_14] : memref<1x16xf32, #tpu.memory_space<vmem>>, vector<1x16xf32>
    %19 = vector.broadcast %18 : vector<1x16xf32> to vector<128x16xf32>
    %20 = arith.addf %17, %19 : vector<128x16xf32>
    %c0_15 = arith.constant 0 : index
    %c0_16 = arith.constant 0 : index
    %21 = vector.load %arg2[%c0_15, %c0_16] : memref<128x16xf32, #tpu.memory_space<vmem>>, vector<128x16xf32>
    %22 = math.log %21 : vector<128x16xf32>
    %cst_17 = arith.constant -1.000000e+03 : f32
    %23 = vector.broadcast %cst_17 : f32 to vector<128x16xf32>
    %24 = arith.maximumf %22, %23 : vector<128x16xf32>
    %25 = arith.addf %20, %24 : vector<128x16xf32>
    %c0_18 = arith.constant 0 : index
    %c0_19 = arith.constant 0 : index
    %26 = vector.load %arg9[%c0_18, %c0_19] : memref<128x16xf32, #tpu.memory_space<vmem>>, vector<128x16xf32>
    tpu.vector_store %arg9[%c0_18, %c0_19], %25 {strides = array<i32>} : memref<128x16xf32, #tpu.memory_space<vmem>>, vector<128x16xf32>,
    return
  }
  func.func @transform_0(%arg0: i32) -> (i32, i32) {
    %c0_i32 = arith.constant 0 : i32
    %c0_i32_0 = arith.constant 0 : i32
    return %arg0, %c0_i32 : i32, i32
  }
  func.func @transform_1(%arg0: i32) -> (i32, i32) {
    %c0_i32 = arith.constant 0 : i32
    %c0_i32_0 = arith.constant 0 : i32
    return %arg0, %c0_i32 : i32, i32
  }
  func.func @transform_2(%arg0: i32) -> (i32, i32) {
    %c0_i32 = arith.constant 0 : i32
    %c0_i32_0 = arith.constant 0 : i32
    %c0_i32_1 = arith.constant 0 : i32
    return %c0_i32, %c0_i32_0 : i32, i32
  }
  func.func @transform_3(%arg0: i32) -> (i32, i32) {
    %c0_i32 = arith.constant 0 : i32
    %c0_i32_0 = arith.constant 0 : i32
    %c0_i32_1 = arith.constant 0 : i32
    return %c0_i32, %c0_i32_0 : i32, i32
  }
  func.func @transform_4(%arg0: i32) -> (i32, i32) {
    %c0_i32 = arith.constant 0 : i32
    %c0_i32_0 = arith.constant 0 : i32
    %c0_i32_1 = arith.constant 0 : i32
    return %c0_i32, %c0_i32_0 : i32, i32
  }
  func.func @transform_5(%arg0: i32) -> (i32, i32) {
    %c0_i32 = arith.constant 0 : i32
    %c0_i32_0 = arith.constant 0 : i32
    %c0_i32_1 = arith.constant 0 : i32
    return %c0_i32, %c0_i32_0 : i32, i32
  }
  func.func @transform_6(%arg0: i32) -> (i32, i32) {
    %c0_i32 = arith.constant 0 : i32
    %c0_i32_0 = arith.constant 0 : i32
    %c0_i32_1 = arith.constant 0 : i32
    return %c0_i32, %c0_i32_0 : i32, i32
  }
  func.func @transform_7(%arg0: i32) -> (i32, i32) {
    %c0_i32 = arith.constant 0 : i32
    %c0_i32_0 = arith.constant 0 : i32
    %c0_i32_1 = arith.constant 0 : i32
    return %c0_i32, %c0_i32_0 : i32, i32
  }
  func.func @transform_8(%arg0: i32) -> (i32, i32) {
    %c0_i32 = arith.constant 0 : i32
    %c0_i32_0 = arith.constant 0 : i32
    return %arg0, %c0_i32 : i32, i32
  }
}

</mosaic_0001>

<llo_original>
// kernel: tpu_custom_call.1
$region0: #{tpu_custom_call.1}
  #allocation0 [shape = 'u32[]', space=smem, size = 0x4, offset = 0x4, fixed_abs, tag = 'smem constant byte address 0x4 - core index']
  #allocation1 [shape = 'u32[144,128]{1,0:T(1,128)}', space=vmem, size = 0x12000, scoped, tag = 'internal scratch']
  %s0 = inlined_call_operand.vmem [shape: f32[256,96], index: 0, kind: input, shape index: {}]
  %s1 = inlined_call_operand.vmem [shape: f32[256,16], index: 1, kind: input, shape index: {}]
  %s2 = inlined_call_operand.vmem [shape: bf16[96,128], index: 2, kind: input, shape index: {}]
  %s3 = inlined_call_operand.vmem [shape: bf16[128,128], index: 3, kind: input, shape index: {}]
  %s4 = inlined_call_operand.vmem [shape: bf16[128,16], index: 4, kind: input, shape index: {}]
  %s5 = inlined_call_operand.vmem [shape: f32[1,128], index: 5, kind: input, shape index: {}]
  %s6 = inlined_call_operand.vmem [shape: f32[1,128], index: 6, kind: input, shape index: {}]
  %s7 = inlined_call_operand.vmem [shape: f32[1,16], index: 7, kind: input, shape index: {}]
  %s8 = inlined_call_operand.vmem [shape: f32[256,16], index: 8, kind: output, shape index: {}]
  %s9 = sld [smem:[#allocation0]]
  $region65: #{tpu_custom_call.1} parent=0
    _
  %s11 = ssub.s32 1, %s9
  %s12 = scalar_select 0, %s11, %s9
  loop: start=0, step=1, limit=4
  $region2: #{tpu_custom_call.1} parent=0 // loop_pre_header
    _
  $region3: #{tpu_custom_call.1} parent=0 // loop_header
    %s14 = sphi 0, %s18
    %p15 = scmp.ge.s32.totalorder %s14, 4
    %s24 = sphi 0, %s26
    %s27 = sphi 0, %s24
    %s28 = sphi 0, %s27
    %s44 = sphi 0, %s28
    %s50 = sphi 0, %s52
    %s53 = sphi 0, %s50
    %s54 = sphi 0, %s53
    %s70 = sphi 0, %s54
    %s74 = sphi 0, %s74
    %s76 = sphi 0, %s74
    %s77 = sphi 0, %s76
    %s91 = sphi 0, %s77
    %s95 = sphi 0, %s95
    %s97 = sphi 0, %s95
    %s98 = sphi 0, %s97
    %s112 = sphi 0, %s98
    %s116 = sphi 0, %s116
    %s118 = sphi 0, %s116
    %s119 = sphi 0, %s118
    %s133 = sphi 0, %s119
    %s137 = sphi 0, %s137
    %s139 = sphi 0, %s137
    %s140 = sphi 0, %s139
    %s154 = sphi 0, %s140
    %s158 = sphi 0, %s158
    %s160 = sphi 0, %s158
    %s161 = sphi 0, %s160
    %s175 = sphi 0, %s161
    %s179 = sphi 0, %s179
    %s181 = sphi 0, %s179
    %s182 = sphi 0, %s181
    %s196 = sphi 0, %s182
    %s202 = sphi 0, %s204
    %s205 = sphi 0, %s202
    %s206 = sphi 0, %s205
    %s222 = sphi 0, %s206
  $region4: #{tpu_custom_call.1} parent=0 // loop_header_branch
    %17 = sbr.rel (%p15) target = $region8
  $region5: #{tpu_custom_call.1} parent=0 // loop_body
    %s19 = ssub.s32 %s14, 1
    %s20 = ssub.s32 %s14, 2
    %s21 = sadd.s32 %s14, 1
    %s22 = ssub.s32 %s14, %s21
    %p23 = scmp.eq.s32.totalorder %s22, 0
    %s25 = sadd.s32 %s24, 1
    %s26 = scalar_select %p23, %s24, %s25
    %p29 = pneg %p23
    %p30 = scmp.eq.s32.totalorder %s14, 1
    %p31 = por %p29, %p30
    %p32 = scmp.ne.s32.totalorder %s24, %s27
    %p33 = scmp.eq.s32.totalorder %s14, 0
    %p34 = por %p32, %p33
    %p35 = scmp.ne.s32.totalorder %s24, %s27
    %p36 = scmp.eq.s32.totalorder %s19, 1
    %p37 = por %p35, %p36
    %p38 = scmp.ne.s32.totalorder %s27, %s28
    %p39 = scmp.eq.s32.totalorder %s19, 0
    %p40 = por %p38, %p39
    %p41 = scmp.ne.s32.totalorder %s27, %s28
    %p42 = scmp.eq.s32.totalorder %s20, 1
    %p43 = por %p41, %p42
    %p45 = scmp.ne.s32.totalorder %s28, %s44
    %p46 = scmp.eq.s32.totalorder %s20, 0
    %p47 = por %p45, %p46
    %s48 = ssub.s32 %s14, %s21
    %p49 = scmp.eq.s32.totalorder %s48, 0
    %s51 = sadd.s32 %s50, 1
    %s52 = scalar_select %p49, %s50, %s51
    %p55 = pneg %p49
    %p56 = scmp.eq.s32.totalorder %s14, 1
    %p57 = por %p55, %p56
    %p58 = scmp.ne.s32.totalorder %s50, %s53
    %p59 = scmp.eq.s32.totalorder %s14, 0
    %p60 = por %p58, %p59
    %p61 = scmp.ne.s32.totalorder %s50, %s53
    %p62 = scmp.eq.s32.totalorder %s19, 1
    %p63 = por %p61, %p62
    %p64 = scmp.ne.s32.totalorder %s53, %s54
    %p65 = scmp.eq.s32.totalorder %s19, 0
    %p66 = por %p64, %p65
    %p67 = scmp.ne.s32.totalorder %s53, %s54
    %p68 = scmp.eq.s32.totalorder %s20, 1
    %p69 = por %p67, %p68
    %p71 = scmp.ne.s32.totalorder %s54, %s70
    %p72 = scmp.eq.s32.totalorder %s20, 0
    %p73 = por %p71, %p72
    %s75 = sadd.s32 %s74, 1
    %p78 = scmp.eq.s32.totalorder %s14, 1
    %p79 = scmp.ne.s32.totalorder %s74, %s76
    %p80 = scmp.eq.s32.totalorder %s14, 0
    %p81 = por %p79, %p80
    %p82 = scmp.ne.s32.totalorder %s74, %s76
    %p83 = scmp.eq.s32.totalorder %s19, 1
    %p84 = por %p82, %p83
    %p85 = scmp.ne.s32.totalorder %s76, %s77
    %p86 = scmp.eq.s32.totalorder %s19, 0
    %p87 = por %p85, %p86
    %p88 = scmp.ne.s32.totalorder %s76, %s77
    %p89 = scmp.eq.s32.totalorder %s20, 1
    %p90 = por %p88, %p89
    %p92 = scmp.ne.s32.totalorder %s77, %s91
    %p93 = scmp.eq.s32.totalorder %s20, 0
    %p94 = por %p92, %p93
    %s96 = sadd.s32 %s95, 1
    %p99 = scmp.eq.s32.totalorder %s14, 1
    %p100 = scmp.ne.s32.totalorder %s95, %s97
    %p101 = scmp.eq.s32.totalorder %s14, 0
    %p102 = por %p100, %p101
    %p103 = scmp.ne.s32.totalorder %s95, %s97
    %p104 = scmp.eq.s32.totalorder %s19, 1
    %p105 = por %p103, %p104
    %p106 = scmp.ne.s32.totalorder %s97, %s98
    %p107 = scmp.eq.s32.totalorder %s19, 0
    %p108 = por %p106, %p107
    %p109 = scmp.ne.s32.totalorder %s97, %s98
    %p110 = scmp.eq.s32.totalorder %s20, 1
    %p111 = por %p109, %p110
    %p113 = scmp.ne.s32.totalorder %s98, %s112
    %p114 = scmp.eq.s32.totalorder %s20, 0
    %p115 = por %p113, %p114
    %s117 = sadd.s32 %s116, 1
    %p120 = scmp.eq.s32.totalorder %s14, 1
    %p121 = scmp.ne.s32.totalorder %s116, %s118
    %p122 = scmp.eq.s32.totalorder %s14, 0
    %p123 = por %p121, %p122
    %p124 = scmp.ne.s32.totalorder %s116, %s118
    %p125 = scmp.eq.s32.totalorder %s19, 1
    %p126 = por %p124, %p125
    %p127 = scmp.ne.s32.totalorder %s118, %s119
    %p128 = scmp.eq.s32.totalorder %s19, 0
    %p129 = por %p127, %p128
    %p130 = scmp.ne.s32.totalorder %s118, %s119
    %p131 = scmp.eq.s32.totalorder %s20, 1
    %p132 = por %p130, %p131
    %p134 = scmp.ne.s32.totalorder %s119, %s133
    %p135 = scmp.eq.s32.totalorder %s20, 0
    %p136 = por %p134, %p135
    %s138 = sadd.s32 %s137, 1
    %p141 = scmp.eq.s32.totalorder %s14, 1
    %p142 = scmp.ne.s32.totalorder %s137, %s139
    %p143 = scmp.eq.s32.totalorder %s14, 0
    %p144 = por %p142, %p143
    %p145 = scmp.ne.s32.totalorder %s137, %s139
    %p146 = scmp.eq.s32.totalorder %s19, 1
    %p147 = por %p145, %p146
    %p148 = scmp.ne.s32.totalorder %s139, %s140
    %p149 = scmp.eq.s32.totalorder %s19, 0
    %p150 = por %p148, %p149
    %p151 = scmp.ne.s32.totalorder %s139, %s140
    %p152 = scmp.eq.s32.totalorder %s20, 1
    %p153 = por %p151, %p152
    %p155 = scmp.ne.s32.totalorder %s140, %s154
    %p156 = scmp.eq.s32.totalorder %s20, 0
    %p157 = por %p155, %p156
    %s159 = sadd.s32 %s158, 1
    %p162 = scmp.eq.s32.totalorder %s14, 1
    %p163 = scmp.ne.s32.totalorder %s158, %s160
    %p164 = scmp.eq.s32.totalorder %s14, 0
    %p165 = por %p163, %p164
    %p166 = scmp.ne.s32.totalorder %s158, %s160
    %p167 = scmp.eq.s32.totalorder %s19, 1
    %p168 = por %p166, %p167
    %p169 = scmp.ne.s32.totalorder %s160, %s161
    %p170 = scmp.eq.s32.totalorder %s19, 0
    %p171 = por %p169, %p170
    %p172 = scmp.ne.s32.totalorder %s160, %s161
    %p173 = scmp.eq.s32.totalorder %s20, 1
    %p174 = por %p172, %p173
    %p176 = scmp.ne.s32.totalorder %s161, %s175
    %p177 = scmp.eq.s32.totalorder %s20, 0
    %p178 = por %p176, %p177
    %s180 = sadd.s32 %s179, 1
    %p183 = scmp.eq.s32.totalorder %s14, 1
    %p184 = scmp.ne.s32.totalorder %s179, %s181
    %p185 = scmp.eq.s32.totalorder %s14, 0
    %p186 = por %p184, %p185
    %p187 = scmp.ne.s32.totalorder %s179, %s181
    %p188 = scmp.eq.s32.totalorder %s19, 1
    %p189 = por %p187, %p188
    %p190 = scmp.ne.s32.totalorder %s181, %s182
    %p191 = scmp.eq.s32.totalorder %s19, 0
    %p192 = por %p190, %p191
    %p193 = scmp.ne.s32.totalorder %s181, %s182
    %p194 = scmp.eq.s32.totalorder %s20, 1
    %p195 = por %p193, %p194
    %p197 = scmp.ne.s32.totalorder %s182, %s196
    %p198 = scmp.eq.s32.totalorder %s20, 0
    %p199 = por %p197, %p198
    %s200 = ssub.s32 %s14, %s21
    %p201 = scmp.eq.s32.totalorder %s200, 0
    %s203 = sadd.s32 %s202, 1
    %s204 = scalar_select %p201, %s202, %s203
    %p207 = pneg %p201
    %p208 = scmp.eq.s32.totalorder %s14, 1
    %p209 = por %p207, %p208
    %p210 = scmp.ne.s32.totalorder %s202, %s205
    %p211 = scmp.eq.s32.totalorder %s14, 0
    %p212 = por %p210, %p211
    %p213 = scmp.ne.s32.totalorder %s202, %s205
    %p214 = scmp.eq.s32.totalorder %s19, 1
    %p215 = por %p213, %p214
    %p216 = scmp.ne.s32.totalorder %s205, %s206
    %p217 = scmp.eq.s32.totalorder %s19, 0
    %p218 = por %p216, %p217
    %p219 = scmp.ne.s32.totalorder %s205, %s206
    %p220 = scmp.eq.s32.totalorder %s20, 1
    %p221 = por %p219, %p220
    %p223 = scmp.ne.s32.totalorder %s206, %s222
    %p224 = scmp.eq.s32.totalorder %s20, 0
    %p225 = por %p223, %p224
    %p226 = scmp.le.s32.totalorder 1, %s14
    %p227 = scmp.lt.s32.totalorder %s14, 3
    %p228 = pnand %p226, %p227
    %p229 = pneg %p228
    // Predicated region
    $region9: #{tpu_custom_call.1} parent=5 // pred_check
      _
    $region10: #{tpu_custom_call.1} parent=5 // pred_check_branch
      %231 = sbr.rel (%p228) target = $region12
    $region11: #{tpu_custom_call.1} parent=5 // pred_region
      %s232 = ssub.s32 %s14, 1
      // Predicated region
      $region13: #{tpu_custom_call.1} parent=11 // pred_check
        %p233 = pneg %p87
      $region14: #{tpu_custom_call.1} parent=11 // pred_check_branch
        %235 = sbr.rel (%p233) target = $region16
      $region15: #{tpu_custom_call.1} parent=11 // pred_region
        _
      $region16: #{tpu_custom_call.1} parent=11 // pred_fallthru
        _
      // Predicated region
      $region17: #{tpu_custom_call.1} parent=11 // pred_check
        %p236 = pneg %p108
      $region18: #{tpu_custom_call.1} parent=11 // pred_check_branch
        %238 = sbr.rel (%p236) target = $region20
      $region19: #{tpu_custom_call.1} parent=11 // pred_region
        _
      $region20: #{tpu_custom_call.1} parent=11 // pred_fallthru
        _
      // Predicated region
      $region21: #{tpu_custom_call.1} parent=11 // pred_check
        %p239 = pneg %p129
      $region22: #{tpu_custom_call.1} parent=11 // pred_check_branch
        %241 = sbr.rel (%p239) target = $region24
      $region23: #{tpu_custom_call.1} parent=11 // pred_region
        _
      $region24: #{tpu_custom_call.1} parent=11 // pred_fallthru
        _
      // Predicated region
      $region25: #{tpu_custom_call.1} parent=11 // pred_check
        %p242 = pneg %p150
      $region26: #{tpu_custom_call.1} parent=11 // pred_check_branch
        %244 = sbr.rel (%p242) target = $region28
      $region27: #{tpu_custom_call.1} parent=11 // pred_region
        _
      $region28: #{tpu_custom_call.1} parent=11 // pred_fallthru
        _
      // Predicated region
      $region29: #{tpu_custom_call.1} parent=11 // pred_check
        %p245 = pneg %p171
      $region30: #{tpu_custom_call.1} parent=11 // pred_check_branch
        %247 = sbr.rel (%p245) target = $region32
      $region31: #{tpu_custom_call.1} parent=11 // pred_region
        _
      $region32: #{tpu_custom_call.1} parent=11 // pred_fallthru
        _
      // Predicated region
      $region33: #{tpu_custom_call.1} parent=11 // pred_check
        %p248 = pneg %p192
      $region34: #{tpu_custom_call.1} parent=11 // pred_check_branch
        %250 = sbr.rel (%p248) target = $region36
      $region35: #{tpu_custom_call.1} parent=11 // pred_region
        _
      $region36: #{tpu_custom_call.1} parent=11 // pred_fallthru
        _
    $region12: #{tpu_custom_call.1} parent=5 // pred_fallthru
      _
    %p251 = scmp.lt.s32.totalorder %s14, 2
    // Predicated region
    $region37: #{tpu_custom_call.1} parent=5 // pred_check
      %p252 = pneg %p251
    $region38: #{tpu_custom_call.1} parent=5 // pred_check_branch
      %254 = sbr.rel (%p252) target = $region40
    $region39: #{tpu_custom_call.1} parent=5 // pred_region
      // Predicated region
      $region41: #{tpu_custom_call.1} parent=39 // pred_check
        %p255 = pneg %p34
      $region42: #{tpu_custom_call.1} parent=39 // pred_check_branch
        %257 = sbr.rel (%p255) target = $region44
      $region43: #{tpu_custom_call.1} parent=39 // pred_region
        %s258 = smul.u32 16, %s14
        %p259 = scmp.lt.s32.totalorder %s258, 31
        %s260 = scalar_select %p259, %s258, 31
        %s261 = smul.addr %s260, 8
        %s262 = scalar_lea.vmem %s0, %s261
        %s263 = smul.u32 16, %s14
      $region44: #{tpu_custom_call.1} parent=39 // pred_fallthru
        _
      // Predicated region
      $region45: #{tpu_custom_call.1} parent=39 // pred_check
        %p264 = pneg %p60
      $region46: #{tpu_custom_call.1} parent=39 // pred_check_branch
        %266 = sbr.rel (%p264) target = $region48
      $region47: #{tpu_custom_call.1} parent=39 // pred_region
        %s267 = smul.u32 16, %s14
        %p268 = scmp.lt.s32.totalorder %s267, 31
        %s269 = scalar_select %p268, %s267, 31
        %s270 = smul.addr %s269, 8
        %s271 = scalar_lea.vmem %s1, %s270
        %s272 = smul.u32 16, %s14
      $region48: #{tpu_custom_call.1} parent=39 // pred_fallthru
        _
    $region40: #{tpu_custom_call.1} parent=5 // pred_fallthru
      _
    %p273 = scmp.le.s32.totalorder 1, %s14
    %p274 = scmp.lt.s32.totalorder %s14, 3
    %p275 = pnand %p273, %p274
    %p276 = pneg %p275
    // Predicated region
    $region49: #{tpu_custom_call.1} parent=5 // pred_check
      _
    $region50: #{tpu_custom_call.1} parent=5 // pred_check_branch
      %278 = sbr.rel (%p275) target = $region52
    $region51: #{tpu_custom_call.1} parent=5 // pred_region
      %s279 = ssub.s32 %s14, 1
      %s280 = smul.u32 16, %s19
      %p281 = scmp.lt.s32.totalorder %s280, 31
      %s282 = scalar_select %p281, %s280, 31
      %s283 = smul.addr %s282, 8
      %s284 = scalar_lea.vmem %s0, %s283
      %p285 = pneg %p40
      %p286 = pneg %p37
      %s287 = smul.u32 16, %s19
      %p288 = scmp.lt.s32.totalorder %s287, 31
      %s289 = scalar_select %p288, %s287, 31
      %s290 = smul.addr %s289, 8
      %s291 = scalar_lea.vmem %s1, %s290
      %p292 = pneg %p66
      %p293 = pneg %p63
      %p294 = pneg %p87
      %p295 = pneg %p84
      %p296 = pneg %p108
      %p297 = pneg %p105
      %p298 = pneg %p129
      %p299 = pneg %p126
      %p300 = pneg %p150
      %p301 = pneg %p147
      %p302 = pneg %p171
      %p303 = pneg %p168
      %p304 = pneg %p192
      %p305 = pneg %p189
      %p306 = pneg %p218
      %p307 = pneg %p215
      %s308 = smul.u32 16, %s19
      %p309 = scmp.lt.s32.totalorder %s308, 31
      %s310 = scalar_select %p309, %s308, 31
      %s311 = smul.addr %s310, 8
      %s312 = scalar_lea.vmem %s8, %s311
      %s313 = smul.u32 16, %s19
      %p314 = scmp.lt.s32.totalorder %s313, 31
      %s315 = scalar_select %p314, %s313, 31
      %s316 = smul.addr %s315, 8
      %s317 = scalar_lea.vmem %s0, %s316
      %s318 = smul.u32 16, %s19
      %s319 = smul.u32 16, %s19
      %p320 = scmp.lt.s32.totalorder %s319, 31
      %s321 = scalar_select %p320, %s319, 31
      %s322 = smul.addr %s321, 8
      %s323 = scalar_lea.vmem %s1, %s322
      %s324 = smul.u32 16, %s19
      %s325 = smul.u32 16, %s19
      %p326 = scmp.lt.s32.totalorder %s325, 31
      %s327 = scalar_select %p326, %s325, 31
      %s328 = smul.addr %s327, 8
      %s329 = scalar_lea.vmem %s8, %s328
      %s330 = smul.u32 16, %s19
      %v332 = vld [vmem:[%s317] sm:$0xff]
      %v333 = vld [vmem:[%s317 + $0x8] sm:$0xff]
      %v334 = vld [vmem:[%s317 + $0x10] sm:$0xff]
      %v335 = vld [vmem:[%s317 + $0x18] sm:$0xff]
      %v336 = vld [vmem:[%s317 + $0x20] sm:$0xff]
      %v337 = vld [vmem:[%s317 + $0x28] sm:$0xff]
      %v338 = vld [vmem:[%s317 + $0x30] sm:$0xff]
      %v339 = vld [vmem:[%s317 + $0x38] sm:$0xff]
      %v340 = vld [vmem:[%s317 + $0x40] sm:$0xff]
      %v341 = vld [vmem:[%s317 + $0x48] sm:$0xff]
      %v342 = vld [vmem:[%s317 + $0x50] sm:$0xff]
      %v343 = vld [vmem:[%s317 + $0x58] sm:$0xff]
      %v344 = vld [vmem:[%s317 + $0x60] sm:$0xff]
      %v345 = vld [vmem:[%s317 + $0x68] sm:$0xff]
      %v346 = vld [vmem:[%s317 + $0x70] sm:$0xff]
      %v347 = vld [vmem:[%s317 + $0x78] sm:$0xff]
      %v348 = vpack.c.bf16 %v333, %v332
      %v349 = vpack.c.bf16 %v335, %v334
      %v350 = vpack.c.bf16 %v337, %v336
      %v351 = vpack.c.bf16 %v339, %v338
      %v352 = vpack.c.bf16 %v341, %v340
      %v353 = vpack.c.bf16 %v343, %v342
      %v354 = vpack.c.bf16 %v345, %v344
      %v355 = vpack.c.bf16 %v347, %v346
      %v356 = vld [vmem:[%s2] sm:$0xf]
      %v357 = vld [vmem:[%s2 + $0x4] sm:$0xf]
      %v358 = vld [vmem:[%s2 + $0x8] sm:$0xf]
      %v359 = vld [vmem:[%s2 + $0xc] sm:$0xf]
      %v360 = vld [vmem:[%s2 + $0x10] sm:$0xf]
      %v361 = vld [vmem:[%s2 + $0x14] sm:$0xf]
      %v362 = vld [vmem:[%s2 + $0x18] sm:$0xf]
      %v363 = vld [vmem:[%s2 + $0x1c] sm:$0xf]
      %v364 = vld [vmem:[%s2 + $0x20] sm:$0xf]
      %v365 = vld [vmem:[%s2 + $0x24] sm:$0xf]
      %v366 = vld [vmem:[%s2 + $0x28] sm:$0xf]
      %v367 = vld [vmem:[%s2 + $0x2c] sm:$0xf]
      %v368 = vld [vmem:[%s5] sm:$0x1]
      %v370 = vlaneseq
      %v371 = vshrl.u32 %v370, 7
      %v372 = vsub.s32 0, %v371
      %v373 = vrot.slane %v368, %v372
      %v387 = vunpack.c.l.b16 %v356
      %v388 = vunpack.c.l.b16 %v357
      %v389 = vunpack.c.l.b16 %v358
      %v390 = vunpack.c.l.b16 %v359
      %v391 = vunpack.c.l.b16 %v360
      %v392 = vunpack.c.l.b16 %v361
      %v393 = vunpack.c.l.b16 %v362
      %v394 = vunpack.c.l.b16 %v363
      %v395 = vunpack.c.l.b16 %v364
      %v396 = vunpack.c.l.b16 %v365
      %v397 = vunpack.c.l.b16 %v366
      %v398 = vunpack.c.l.b16 %v367
      %v399 = vpack.c.b16 %v388, %v387
      %v400 = vpack.c.b16 %v390, %v389
      %v401 = vpack.c.b16 %v392, %v391
      %v402 = vpack.c.b16 %v394, %v393
      %v403 = vpack.c.b16 %v396, %v395
      %v404 = vpack.c.b16 %v398, %v397
      %vm411 = vcmask 785408
      %v413 = vsel %vm411, %v348, 0
      %v416 = vsel %vm411, %v349, 0
      %v419 = vsel %vm411, %v350, 0
      %v422 = vsel %vm411, %v351, 0
      %v425 = vsel %vm411, %v352, 0
      %v428 = vsel %vm411, %v353, 0
      %v431 = vsel %vm411, %v354, 0
      %v434 = vsel %vm411, %v355, 0
      %436 = vmatprep.subr.bf16.mxu0 0
      %437 = vmatpush1.bf16.msra.mxu0 %v399
      %438 = vmatprep.subr.bf16.mxu0 0
      %439 = vmatpush1.bf16.msra.mxu0 %v400
      %440 = vmatprep.subr.bf16.mxu0 0
      %441 = vmatpush1.bf16.msra.mxu0 %v401
      %442 = vmatprep.subr.bf16.mxu0 0
      %443 = vmatpush1.bf16.msra.mxu0 %v402
      %444 = vmatprep.subr.bf16.mxu0 0
      %445 = vmatpush1.bf16.msra.mxu0 %v403
      %446 = vmatprep.subr.bf16.mxu0 0
      %447 = vmatpush1.bf16.msra.mxu0 %v404
      %448 = vmatprep.subr.bf16.mxu0 0
      %449 = vmatpush1.bf16.msra.mxu0 0
      %450 = vmatprep.subr.bf16.mxu0 0
      %451 = vmatpush1.bf16.msra.mxu0 0
      %452 = vmatprep.subr.bf16.mxu0 0
      %453 = vmatpush1.bf16.msra.mxu0 0
      %454 = vmatprep.subr.bf16.mxu0 0
      %455 = vmatpush1.bf16.msra.mxu0 0
      %456 = vmatprep.subr.bf16.mxu0 0
      %457 = vmatpush1.bf16.msra.mxu0 0
      %458 = vmatprep.subr.bf16.mxu0 0
      %459 = vmatpush1.bf16.msra.mxu0 0
      %460 = vmatprep.subr.bf16.mxu0 0
      %461 = vmatpush1.bf16.msra.mxu0 0
      %462 = vmatprep.subr.bf16.mxu0 0
      %463 = vmatpush1.bf16.msra.mxu0 0
      %464 = vmatprep.subr.bf16.mxu0 0
      %465 = vmatpush1.bf16.msra.mxu0 0
      %466 = vmatprep.subr.bf16.mxu0 0
      %467 = vmatpush1.bf16.msra.mxu0 0
      %468 = vmatprep.mubr.bf16.mxu0 0
      %469 = vmatmul.mubr.bf16.gmra.mrb[0].mxu0 %v413
      %v470 = vpop.f32.mrb[0].mxu0
      %v471 = vadd.f32 %v373, %v470
      %v472 = vpop.f32.mrb[0].mxu0
      %v473 = vpop.f32.mrb[0].mxu0
      %v474 = vadd.f32 %v373, %v473
      %v475 = vpop.f32.mrb[0].mxu0
      %476 = vmatprep.mubr.bf16.mxu0 0
      %477 = vmatmul.mubr.bf16.gmra.mrb[0].mxu0 %v416
      %v478 = vpop.f32.mrb[0].mxu0
      %v479 = vadd.f32 %v373, %v478
      %v480 = vpop.f32.mrb[0].mxu0
      %v481 = vpop.f32.mrb[0].mxu0
      %v482 = vadd.f32 %v373, %v481
      %v483 = vpop.f32.mrb[0].mxu0
      %484 = vmatprep.mubr.bf16.mxu0 0
      %485 = vmatmul.mubr.bf16.gmra.mrb[0].mxu0 %v419
      %v486 = vpop.f32.mrb[0].mxu0
      %v487 = vadd.f32 %v373, %v486
      %v488 = vpop.f32.mrb[0].mxu0
      %v489 = vpop.f32.mrb[0].mxu0
      %v490 = vadd.f32 %v373, %v489
      %v491 = vpop.f32.mrb[0].mxu0
      %492 = vmatprep.mubr.bf16.mxu0 0
      %493 = vmatmul.mubr.bf16.gmra.mrb[0].mxu0 %v422
      %v494 = vpop.f32.mrb[0].mxu0
      %v495 = vadd.f32 %v373, %v494
      %v496 = vpop.f32.mrb[0].mxu0
      %v497 = vpop.f32.mrb[0].mxu0
      %v498 = vadd.f32 %v373, %v497
      %v499 = vpop.f32.mrb[0].mxu0
      %500 = vmatprep.mubr.bf16.mxu0 0
      %501 = vmatmul.mubr.bf16.gmra.mrb[0].mxu0 %v425
      %v502 = vpop.f32.mrb[0].mxu0
      %v503 = vadd.f32 %v373, %v502
      %v504 = vpop.f32.mrb[0].mxu0
      %v505 = vpop.f32.mrb[0].mxu0
      %v506 = vadd.f32 %v373, %v505
      %v507 = vpop.f32.mrb[0].mxu0
      %508 = vmatprep.mubr.bf16.mxu0 0
      %509 = vmatmul.mubr.bf16.gmra.mrb[0].mxu0 %v428
      %v510 = vpop.f32.mrb[0].mxu0
      %v511 = vadd.f32 %v373, %v510
      %v512 = vpop.f32.mrb[0].mxu0
      %v513 = vpop.f32.mrb[0].mxu0
      %v514 = vadd.f32 %v373, %v513
      %v515 = vpop.f32.mrb[0].mxu0
      %516 = vmatprep.mubr.bf16.mxu0 0
      %517 = vmatmul.mubr.bf16.gmra.mrb[0].mxu0 %v431
      %v518 = vpop.f32.mrb[0].mxu0
      %v519 = vadd.f32 %v373, %v518
      %v520 = vpop.f32.mrb[0].mxu0
      %v521 = vpop.f32.mrb[0].mxu0
      %v522 = vadd.f32 %v373, %v521
      %v523 = vpop.f32.mrb[0].mxu0
      %524 = vmatprep.mubr.bf16.mxu0 0
      %525 = vmatmul.mubr.bf16.gmra.mrb[0].mxu0 %v434
      %v526 = vpop.f32.mrb[0].mxu0
      %v527 = vadd.f32 %v373, %v526
      %v528 = vpop.f32.mrb[0].mxu0
      %v529 = vpop.f32.mrb[0].mxu0
      %v530 = vadd.f32 %v373, %v529
      %v531 = vpop.f32.mrb[0].mxu0
      %532 = vdwg.mxu0
      %v533 = vtanh.pop %v471
      %v534 = vtanh.pop %v474
      %v535 = vtanh.pop %v479
      %v536 = vtanh.pop %v482
      %v537 = vtanh.pop %v487
      %v538 = vtanh.pop %v490
      %v539 = vtanh.pop %v495
      %v540 = vtanh.pop %v498
      %v541 = vtanh.pop %v503
      %v542 = vtanh.pop %v506
      %v543 = vtanh.pop %v511
      %v544 = vtanh.pop %v514
      %v545 = vtanh.pop %v519
      %v546 = vtanh.pop %v522
      %v547 = vtanh.pop %v527
      %v548 = vtanh.pop %v530
      %v549 = vpack.c.bf16 %v534, %v533
      %v550 = vpack.c.bf16 %v536, %v535
      %v551 = vpack.c.bf16 %v538, %v537
      %v552 = vpack.c.bf16 %v540, %v539
      %v553 = vpack.c.bf16 %v542, %v541
      %v554 = vpack.c.bf16 %v544, %v543
      %v555 = vpack.c.bf16 %v546, %v545
      %v556 = vpack.c.bf16 %v548, %v547
      %v557 = vld [vmem:[%s3] sm:$0xf]
      %v558 = vld [vmem:[%s3 + $0x4] sm:$0xf]
      %v559 = vld [vmem:[%s3 + $0x8] sm:$0xf]
      %v560 = vld [vmem:[%s3 + $0xc] sm:$0xf]
      %v561 = vld [vmem:[%s3 + $0x10] sm:$0xf]
      %v562 = vld [vmem:[%s3 + $0x14] sm:$0xf]
      %v563 = vld [vmem:[%s3 + $0x18] sm:$0xf]
      %v564 = vld [vmem:[%s3 + $0x1c] sm:$0xf]
      %v565 = vld [vmem:[%s3 + $0x20] sm:$0xf]
      %v566 = vld [vmem:[%s3 + $0x24] sm:$0xf]
      %v567 = vld [vmem:[%s3 + $0x28] sm:$0xf]
      %v568 = vld [vmem:[%s3 + $0x2c] sm:$0xf]
      %v569 = vld [vmem:[%s3 + $0x30] sm:$0xf]
      %v570 = vld [vmem:[%s3 + $0x34] sm:$0xf]
      %v571 = vld [vmem:[%s3 + $0x38] sm:$0xf]
      %v572 = vld [vmem:[%s3 + $0x3c] sm:$0xf]
      %v573 = vld [vmem:[%s6] sm:$0x1]
      %v575 = vlaneseq
      %v576 = vshrl.u32 %v575, 7
      %v577 = vsub.s32 0, %v576
      %v578 = vrot.slane %v573, %v577
      %v596 = vunpack.c.l.b16 %v557
      %v597 = vunpack.c.l.b16 %v558
      %v598 = vunpack.c.l.b16 %v559
      %v599 = vunpack.c.l.b16 %v560
      %v600 = vunpack.c.l.b16 %v561
      %v601 = vunpack.c.l.b16 %v562
      %v602 = vunpack.c.l.b16 %v563
      %v603 = vunpack.c.l.b16 %v564
      %v604 = vunpack.c.l.b16 %v565
      %v605 = vunpack.c.l.b16 %v566
      %v606 = vunpack.c.l.b16 %v567
      %v607 = vunpack.c.l.b16 %v568
      %v608 = vunpack.c.l.b16 %v569
      %v609 = vunpack.c.l.b16 %v570
      %v610 = vunpack.c.l.b16 %v571
      %v611 = vunpack.c.l.b16 %v572
      %v612 = vpack.c.b16 %v597, %v596
      %v613 = vpack.c.b16 %v599, %v598
      %v614 = vpack.c.b16 %v601, %v600
      %v615 = vpack.c.b16 %v603, %v602
      %v616 = vpack.c.b16 %v605, %v604
      %v617 = vpack.c.b16 %v607, %v606
      %v618 = vpack.c.b16 %v609, %v608
      %v619 = vpack.c.b16 %v611, %v610
      %628 = vmatprep.subr.bf16.mxu0 0
      %629 = vmatpush1.bf16.msra.mxu0 %v612
      %630 = vmatprep.subr.bf16.mxu0 0
      %631 = vmatpush1.bf16.msra.mxu0 %v613
      %632 = vmatprep.subr.bf16.mxu0 0
      %633 = vmatpush1.bf16.msra.mxu0 %v614
      %634 = vmatprep.subr.bf16.mxu0 0
      %635 = vmatpush1.bf16.msra.mxu0 %v615
      %636 = vmatprep.subr.bf16.mxu0 0
      %637 = vmatpush1.bf16.msra.mxu0 %v616
      %638 = vmatprep.subr.bf16.mxu0 0
      %639 = vmatpush1.bf16.msra.mxu0 %v617
      %640 = vmatprep.subr.bf16.mxu0 0
      %641 = vmatpush1.bf16.msra.mxu0 %v618
      %642 = vmatprep.subr.bf16.mxu0 0
      %643 = vmatpush1.bf16.msra.mxu0 %v619
      %644 = vmatprep.subr.bf16.mxu0 0
      %645 = vmatpush1.bf16.msra.mxu0 0
      %646 = vmatprep.subr.bf16.mxu0 0
      %647 = vmatpush1.bf16.msra.mxu0 0
      %648 = vmatprep.subr.bf16.mxu0 0
      %649 = vmatpush1.bf16.msra.mxu0 0
      %650 = vmatprep.subr.bf16.mxu0 0
      %651 = vmatpush1.bf16.msra.mxu0 0
      %652 = vmatprep.subr.bf16.mxu0 0
      %653 = vmatpush1.bf16.msra.mxu0 0
      %654 = vmatprep.subr.bf16.mxu0 0
      %655 = vmatpush1.bf16.msra.mxu0 0
      %656 = vmatprep.subr.bf16.mxu0 0
      %657 = vmatpush1.bf16.msra.mxu0 0
      %658 = vmatprep.subr.bf16.mxu0 0
      %659 = vmatpush1.bf16.msra.mxu0 0
      %660 = vmatprep.mubr.bf16.mxu0 0
      %661 = vmatmul.mubr.bf16.gmra.mrb[0].mxu0 %v549
      %v662 = vpop.f32.mrb[0].mxu0
      %v663 = vadd.f32 %v578, %v662
      %v664 = vpop.f32.mrb[0].mxu0
      %v665 = vpop.f32.mrb[0].mxu0
      %v666 = vadd.f32 %v578, %v665
      %v667 = vpop.f32.mrb[0].mxu0
      %668 = vmatprep.mubr.bf16.mxu0 0
      %669 = vmatmul.mubr.bf16.gmra.mrb[0].mxu0 %v550
      %v670 = vpop.f32.mrb[0].mxu0
      %v671 = vadd.f32 %v578, %v670
      %v672 = vpop.f32.mrb[0].mxu0
      %v673 = vpop.f32.mrb[0].mxu0
      %v674 = vadd.f32 %v578, %v673
      %v675 = vpop.f32.mrb[0].mxu0
      %676 = vmatprep.mubr.bf16.mxu0 0
      %677 = vmatmul.mubr.bf16.gmra.mrb[0].mxu0 %v551
      %v678 = vpop.f32.mrb[0].mxu0
      %v679 = vadd.f32 %v578, %v678
      %v680 = vpop.f32.mrb[0].mxu0
      %v681 = vpop.f32.mrb[0].mxu0
      %v682 = vadd.f32 %v578, %v681
      %v683 = vpop.f32.mrb[0].mxu0
      %684 = vmatprep.mubr.bf16.mxu0 0
      %685 = vmatmul.mubr.bf16.gmra.mrb[0].mxu0 %v552
      %v686 = vpop.f32.mrb[0].mxu0
      %v687 = vadd.f32 %v578, %v686
      %v688 = vpop.f32.mrb[0].mxu0
      %v689 = vpop.f32.mrb[0].mxu0
      %v690 = vadd.f32 %v578, %v689
      %v691 = vpop.f32.mrb[0].mxu0
      %692 = vmatprep.mubr.bf16.mxu0 0
      %693 = vmatmul.mubr.bf16.gmra.mrb[0].mxu0 %v553
      %v694 = vpop.f32.mrb[0].mxu0
      %v695 = vadd.f32 %v578, %v694
      %v696 = vpop.f32.mrb[0].mxu0
      %v697 = vpop.f32.mrb[0].mxu0
      %v698 = vadd.f32 %v578, %v697
      %v699 = vpop.f32.mrb[0].mxu0
      %700 = vmatprep.mubr.bf16.mxu0 0
      %701 = vmatmul.mubr.bf16.gmra.mrb[0].mxu0 %v554
      %v702 = vpop.f32.mrb[0].mxu0
      %v703 = vadd.f32 %v578, %v702
      %v704 = vpop.f32.mrb[0].mxu0
      %v705 = vpop.f32.mrb[0].mxu0
      %v706 = vadd.f32 %v578, %v705
      %v707 = vpop.f32.mrb[0].mxu0
      %708 = vmatprep.mubr.bf16.mxu0 0
      %709 = vmatmul.mubr.bf16.gmra.mrb[0].mxu0 %v555
      %v710 = vpop.f32.mrb[0].mxu0
      %v711 = vadd.f32 %v578, %v710
      %v712 = vpop.f32.mrb[0].mxu0
      %v713 = vpop.f32.mrb[0].mxu0
      %v714 = vadd.f32 %v578, %v713
      %v715 = vpop.f32.mrb[0].mxu0
      %716 = vmatprep.mubr.bf16.mxu0 0
      %717 = vmatmul.mubr.bf16.gmra.mrb[0].mxu0 %v556
      %v718 = vpop.f32.mrb[0].mxu0
      %v719 = vadd.f32 %v578, %v718
      %v720 = vpop.f32.mrb[0].mxu0
      %v721 = vpop.f32.mrb[0].mxu0
      %v722 = vadd.f32 %v578, %v721
      %v723 = vpop.f32.mrb[0].mxu0
      %724 = vdwg.mxu0
      %v725 = vtanh.pop %v663
      %v726 = vtanh.pop %v666
      %v727 = vtanh.pop %v671
      %v728 = vtanh.pop %v674
      %v729 = vtanh.pop %v679
      %v730 = vtanh.pop %v682
      %v731 = vtanh.pop %v687
      %v732 = vtanh.pop %v690
      %v733 = vtanh.pop %v695
      %v734 = vtanh.pop %v698
      %v735 = vtanh.pop %v703
      %v736 = vtanh.pop %v706
      %v737 = vtanh.pop %v711
      %v738 = vtanh.pop %v714
      %v739 = vtanh.pop %v719
      %v740 = vtanh.pop %v722
      %v741 = vpack.c.bf16 %v726, %v725
      %v742 = vpack.c.bf16 %v728, %v727
      %v743 = vpack.c.bf16 %v730, %v729
      %v744 = vpack.c.bf16 %v732, %v731
      %v745 = vpack.c.bf16 %v734, %v733
      %v746 = vpack.c.bf16 %v736, %v735
      %v747 = vpack.c.bf16 %v738, %v737
      %v748 = vpack.c.bf16 %v740, %v739
      %v749 = vld [vmem:[%s4] sm:$0xf]
      %v750 = vld [vmem:[%s4 + $0x4] sm:$0xf]
      %v751 = vld [vmem:[%s4 + $0x8] sm:$0xf]
      %v752 = vld [vmem:[%s4 + $0xc] sm:$0xf]
      %v753 = vld [vmem:[%s4 + $0x10] sm:$0xf]
      %v754 = vld [vmem:[%s4 + $0x14] sm:$0xf]
      %v755 = vld [vmem:[%s4 + $0x18] sm:$0xf]
      %v756 = vld [vmem:[%s4 + $0x1c] sm:$0xf]
      %v757 = vld [vmem:[%s4 + $0x20] sm:$0xf]
      %v758 = vld [vmem:[%s4 + $0x24] sm:$0xf]
      %v759 = vld [vmem:[%s4 + $0x28] sm:$0xf]
      %v760 = vld [vmem:[%s4 + $0x2c] sm:$0xf]
      %v761 = vld [vmem:[%s4 + $0x30] sm:$0xf]
      %v762 = vld [vmem:[%s4 + $0x34] sm:$0xf]
      %v763 = vld [vmem:[%s4 + $0x38] sm:$0xf]
      %v764 = vld [vmem:[%s4 + $0x3c] sm:$0xf]
      %v765 = vld [vmem:[%s7] sm:$0x1]
      %v767 = vlaneseq
      %v768 = vshrl.u32 %v767, 7
      %v769 = vsub.s32 0, %v768
      %v770 = vrot.slane %v765, %v769
      %v788 = vunpack.c.l.b16 %v749
      %v789 = vunpack.c.l.b16 %v750
      %v790 = vunpack.c.l.b16 %v751
      %v791 = vunpack.c.l.b16 %v752
      %v792 = vunpack.c.l.b16 %v753
      %v793 = vunpack.c.l.b16 %v754
      %v794 = vunpack.c.l.b16 %v755
      %v795 = vunpack.c.l.b16 %v756
      %v796 = vunpack.c.l.b16 %v757
      %v797 = vunpack.c.l.b16 %v758
      %v798 = vunpack.c.l.b16 %v759
      %v799 = vunpack.c.l.b16 %v760
      %v800 = vunpack.c.l.b16 %v761
      %v801 = vunpack.c.l.b16 %v762
      %v802 = vunpack.c.l.b16 %v763
      %v803 = vunpack.c.l.b16 %v764
      %v804 = vpack.c.b16 %v789, %v788
      %v805 = vpack.c.b16 %v791, %v790
      %v806 = vpack.c.b16 %v793, %v792
      %v807 = vpack.c.b16 %v795, %v794
      %v808 = vpack.c.b16 %v797, %v796
      %v809 = vpack.c.b16 %v799, %v798
      %v810 = vpack.c.b16 %v801, %v800
      %v811 = vpack.c.b16 %v803, %v802
      %820 = vmatprep.subr.bf16.mxu0 0
      %821 = vmatpush1.bf16.msra.mxu0 %v804
      %822 = vmatprep.subr.bf16.mxu0 0
      %823 = vmatpush1.bf16.msra.mxu0 %v805
      %824 = vmatprep.subr.bf16.mxu0 0
      %825 = vmatpush1.bf16.msra.mxu0 %v806
      %826 = vmatprep.subr.bf16.mxu0 0
      %827 = vmatpush1.bf16.msra.mxu0 %v807
      %828 = vmatprep.subr.bf16.mxu0 0
      %829 = vmatpush1.bf16.msra.mxu0 %v808
      %830 = vmatprep.subr.bf16.mxu0 0
      %831 = vmatpush1.bf16.msra.mxu0 %v809
      %832 = vmatprep.subr.bf16.mxu0 0
      %833 = vmatpush1.bf16.msra.mxu0 %v810
      %834 = vmatprep.subr.bf16.mxu0 0
      %835 = vmatpush1.bf16.msra.mxu0 %v811
      %836 = vmatprep.subr.bf16.mxu0 0
      %837 = vmatpush1.bf16.msra.mxu0 0
      %838 = vmatprep.subr.bf16.mxu0 0
      %839 = vmatpush1.bf16.msra.mxu0 0
      %840 = vmatprep.subr.bf16.mxu0 0
      %841 = vmatpush1.bf16.msra.mxu0 0
      %842 = vmatprep.subr.bf16.mxu0 0
      %843 = vmatpush1.bf16.msra.mxu0 0
      %844 = vmatprep.subr.bf16.mxu0 0
      %845 = vmatpush1.bf16.msra.mxu0 0
      %846 = vmatprep.subr.bf16.mxu0 0
      %847 = vmatpush1.bf16.msra.mxu0 0
      %848 = vmatprep.subr.bf16.mxu0 0
      %849 = vmatpush1.bf16.msra.mxu0 0
      %850 = vmatprep.subr.bf16.mxu0 0
      %851 = vmatpush1.bf16.msra.mxu0 0
      %852 = vmatprep.mubr.bf16.mxu0 0
      %853 = vmatmul.mubr.bf16.gmra.mrb[0].mxu0 %v741
      %v854 = vpop.f32.mrb[0].mxu0
      %v855 = vadd.f32 %v770, %v854
      %v856 = vpop.f32.mrb[0].mxu0
      %v857 = vpop.f32.mrb[0].mxu0
      %v858 = vadd.f32 %v770, %v857
      %v859 = vpop.f32.mrb[0].mxu0
      %860 = vmatprep.mubr.bf16.mxu0 0
      %861 = vmatmul.mubr.bf16.gmra.mrb[0].mxu0 %v742
      %v862 = vpop.f32.mrb[0].mxu0
      %v863 = vadd.f32 %v770, %v862
      %v864 = vpop.f32.mrb[0].mxu0
      %v865 = vpop.f32.mrb[0].mxu0
      %v866 = vadd.f32 %v770, %v865
      %v867 = vpop.f32.mrb[0].mxu0
      %868 = vmatprep.mubr.bf16.mxu0 0
      %869 = vmatmul.mubr.bf16.gmra.mrb[0].mxu0 %v743
      %v870 = vpop.f32.mrb[0].mxu0
      %v871 = vadd.f32 %v770, %v870
      %v872 = vpop.f32.mrb[0].mxu0
      %v873 = vpop.f32.mrb[0].mxu0
      %v874 = vadd.f32 %v770, %v873
      %v875 = vpop.f32.mrb[0].mxu0
      %876 = vmatprep.mubr.bf16.mxu0 0
      %877 = vmatmul.mubr.bf16.gmra.mrb[0].mxu0 %v744
      %v878 = vpop.f32.mrb[0].mxu0
      %v879 = vadd.f32 %v770, %v878
      %v880 = vpop.f32.mrb[0].mxu0
      %v881 = vpop.f32.mrb[0].mxu0
      %v882 = vadd.f32 %v770, %v881
      %v883 = vpop.f32.mrb[0].mxu0
      %884 = vmatprep.mubr.bf16.mxu0 0
      %885 = vmatmul.mubr.bf16.gmra.mrb[0].mxu0 %v745
      %v886 = vpop.f32.mrb[0].mxu0
      %v887 = vadd.f32 %v770, %v886
      %v888 = vpop.f32.mrb[0].mxu0
      %v889 = vpop.f32.mrb[0].mxu0
      %v890 = vadd.f32 %v770, %v889
      %v891 = vpop.f32.mrb[0].mxu0
      %892 = vmatprep.mubr.bf16.mxu0 0
      %893 = vmatmul.mubr.bf16.gmra.mrb[0].mxu0 %v746
      %v894 = vpop.f32.mrb[0].mxu0
      %v895 = vadd.f32 %v770, %v894
      %v896 = vpop.f32.mrb[0].mxu0
      %v897 = vpop.f32.mrb[0].mxu0
      %v898 = vadd.f32 %v770, %v897
      %v899 = vpop.f32.mrb[0].mxu0
      %900 = vmatprep.mubr.bf16.mxu0 0
      %901 = vmatmul.mubr.bf16.gmra.mrb[0].mxu0 %v747
      %v902 = vpop.f32.mrb[0].mxu0
      %v903 = vadd.f32 %v770, %v902
      %v904 = vpop.f32.mrb[0].mxu0
      %v905 = vpop.f32.mrb[0].mxu0
      %v906 = vadd.f32 %v770, %v905
      %v907 = vpop.f32.mrb[0].mxu0
      %908 = vmatprep.mubr.bf16.mxu0 0
      %909 = vmatmul.mubr.bf16.gmra.mrb[0].mxu0 %v748
      %v910 = vpop.f32.mrb[0].mxu0
      %v911 = vadd.f32 %v770, %v910
      %v912 = vpop.f32.mrb[0].mxu0
      %v913 = vpop.f32.mrb[0].mxu0
      %v914 = vadd.f32 %v770, %v913
      %v915 = vpop.f32.mrb[0].mxu0
      %916 = vdwg.mxu0
      %v917 = vld [vmem:[%s323] sm:$0xff]
      %v918 = vld [vmem:[%s323 + $0x8] sm:$0xff]
      %v919 = vld [vmem:[%s323 + $0x10] sm:$0xff]
      %v920 = vld [vmem:[%s323 + $0x18] sm:$0xff]
      %v921 = vld [vmem:[%s323 + $0x20] sm:$0xff]
      %v922 = vld [vmem:[%s323 + $0x28] sm:$0xff]
      %v923 = vld [vmem:[%s323 + $0x30] sm:$0xff]
      %v924 = vld [vmem:[%s323 + $0x38] sm:$0xff]
      %v925 = vld [vmem:[%s323 + $0x40] sm:$0xff]
      %v926 = vld [vmem:[%s323 + $0x48] sm:$0xff]
      %v927 = vld [vmem:[%s323 + $0x50] sm:$0xff]
      %v928 = vld [vmem:[%s323 + $0x58] sm:$0xff]
      %v929 = vld [vmem:[%s323 + $0x60] sm:$0xff]
      %v930 = vld [vmem:[%s323 + $0x68] sm:$0xff]
      %v931 = vld [vmem:[%s323 + $0x70] sm:$0xff]
      %v932 = vld [vmem:[%s323 + $0x78] sm:$0xff]
      %v933 = vlog2.pop %v917
      %v934 = vmul.f32 %v933, 0.6931472
      %v935 = vlog2.pop %v918
      %v936 = vmul.f32 %v935, 0.6931472
      %v937 = vlog2.pop %v919
      %v938 = vmul.f32 %v937, 0.6931472
      %v939 = vlog2.pop %v920
      %v940 = vmul.f32 %v939, 0.6931472
      %v941 = vlog2.pop %v921
      %v942 = vmul.f32 %v941, 0.6931472
      %v943 = vlog2.pop %v922
      %v944 = vmul.f32 %v943, 0.6931472
      %v945 = vlog2.pop %v923
      %v946 = vmul.f32 %v945, 0.6931472
      %v947 = vlog2.pop %v924
      %v948 = vmul.f32 %v947, 0.6931472
      %v949 = vlog2.pop %v925
      %v950 = vmul.f32 %v949, 0.6931472
      %v951 = vlog2.pop %v926
      %v952 = vmul.f32 %v951, 0.6931472
      %v953 = vlog2.pop %v927
      %v954 = vmul.f32 %v953, 0.6931472
      %v955 = vlog2.pop %v928
      %v956 = vmul.f32 %v955, 0.6931472
      %v957 = vlog2.pop %v929
      %v958 = vmul.f32 %v957, 0.6931472
      %v959 = vlog2.pop %v930
      %v960 = vmul.f32 %v959, 0.6931472
      %v961 = vlog2.pop %v931
      %v962 = vmul.f32 %v961, 0.6931472
      %v963 = vlog2.pop %v932
      %v964 = vmul.f32 %v963, 0.6931472
      %v965 = vmax.f32 %v934, -1000.0
      %v966 = vmax.f32 %v936, -1000.0
      %v967 = vmax.f32 %v938, -1000.0
      %v968 = vmax.f32 %v940, -1000.0
      %v969 = vmax.f32 %v942, -1000.0
      %v970 = vmax.f32 %v944, -1000.0
      %v971 = vmax.f32 %v946, -1000.0
      %v972 = vmax.f32 %v948, -1000.0
      %v973 = vmax.f32 %v950, -1000.0
      %v974 = vmax.f32 %v952, -1000.0
      %v975 = vmax.f32 %v954, -1000.0
      %v976 = vmax.f32 %v956, -1000.0
      %v977 = vmax.f32 %v958, -1000.0
      %v978 = vmax.f32 %v960, -1000.0
      %v979 = vmax.f32 %v962, -1000.0
      %v980 = vmax.f32 %v964, -1000.0
      %v981 = vadd.f32 %v855, %v965
      %v982 = vadd.f32 %v858, %v966
      %v983 = vadd.f32 %v863, %v967
      %v984 = vadd.f32 %v866, %v968
      %v985 = vadd.f32 %v871, %v969
      %v986 = vadd.f32 %v874, %v970
      %v987 = vadd.f32 %v879, %v971
      %v988 = vadd.f32 %v882, %v972
      %v989 = vadd.f32 %v887, %v973
      %v990 = vadd.f32 %v890, %v974
      %v991 = vadd.f32 %v895, %v975
      %v992 = vadd.f32 %v898, %v976
      %v993 = vadd.f32 %v903, %v977
      %v994 = vadd.f32 %v906, %v978
      %v995 = vadd.f32 %v911, %v979
      %v996 = vadd.f32 %v914, %v980
      %vm997 = vcmask 130048
      %998 = vst.msk [vmem:[%s329] sm:$0xff] %vm997, %v981
      %999 = vst.msk [vmem:[%s329 + $0x8] sm:$0xff] %vm997, %v982
      %1000 = vst.msk [vmem:[%s329 + $0x10] sm:$0xff] %vm997, %v983
      %1001 = vst.msk [vmem:[%s329 + $0x18] sm:$0xff] %vm997, %v984
      %1002 = vst.msk [vmem:[%s329 + $0x20] sm:$0xff] %vm997, %v985
      %1003 = vst.msk [vmem:[%s329 + $0x28] sm:$0xff] %vm997, %v986
      %1004 = vst.msk [vmem:[%s329 + $0x30] sm:$0xff] %vm997, %v987
      %1005 = vst.msk [vmem:[%s329 + $0x38] sm:$0xff] %vm997, %v988
      %1006 = vst.msk [vmem:[%s329 + $0x40] sm:$0xff] %vm997, %v989
      %1007 = vst.msk [vmem:[%s329 + $0x48] sm:$0xff] %vm997, %v990
      %1008 = vst.msk [vmem:[%s329 + $0x50] sm:$0xff] %vm997, %v991
      %1009 = vst.msk [vmem:[%s329 + $0x58] sm:$0xff] %vm997, %v992
      %1010 = vst.msk [vmem:[%s329 + $0x60] sm:$0xff] %vm997, %v993
      %1011 = vst.msk [vmem:[%s329 + $0x68] sm:$0xff] %vm997, %v994
      %1012 = vst.msk [vmem:[%s329 + $0x70] sm:$0xff] %vm997, %v995
      %1013 = vst.msk [vmem:[%s329 + $0x78] sm:$0xff] %vm997, %v996
      %s1014 = smul.u32 16, %s19
      %p1015 = scmp.lt.s32.totalorder %s1014, 31
      %s1016 = scalar_select %p1015, %s1014, 31
      %s1017 = smul.addr %s1016, 8
      %s1018 = scalar_lea.vmem %s8, %s1017
      // Predicated region
      $region53: #{tpu_custom_call.1} parent=51 // pred_check
        %p1019 = pneg %p215
      $region54: #{tpu_custom_call.1} parent=51 // pred_check_branch
        %1021 = sbr.rel (%p1019) target = $region56
      $region55: #{tpu_custom_call.1} parent=51 // pred_region
        %s1022 = smul.u32 16, %s19
      $region56: #{tpu_custom_call.1} parent=51 // pred_fallthru
        _
    $region52: #{tpu_custom_call.1} parent=5 // pred_fallthru
      _
    %p1023 = scmp.le.s32.totalorder 2, %s14
    // Predicated region
    $region57: #{tpu_custom_call.1} parent=5 // pred_check
      %p1024 = pneg %p1023
    $region58: #{tpu_custom_call.1} parent=5 // pred_check_branch
      %1026 = sbr.rel (%p1024) target = $region60
    $region59: #{tpu_custom_call.1} parent=5 // pred_region
      %s1027 = ssub.s32 %s14, 2
      // Predicated region
      $region61: #{tpu_custom_call.1} parent=59 // pred_check
        %p1028 = pneg %p221
      $region62: #{tpu_custom_call.1} parent=59 // pred_check_branch
        %1030 = sbr.rel (%p1028) target = $region64
      $region63: #{tpu_custom_call.1} parent=59 // pred_region
        %s1031 = smul.u32 16, %s20
        %p1032 = scmp.lt.s32.totalorder %s1031, 31
        %s1033 = scalar_select %p1032, %s1031, 31
        %s1034 = smul.addr %s1033, 8
        %s1035 = scalar_lea.vmem %s8, %s1034
      $region64: #{tpu_custom_call.1} parent=59 // pred_fallthru
        _
    $region60: #{tpu_custom_call.1} parent=5 // pred_fallthru
      _
  $region6: #{tpu_custom_call.1} parent=0 // loop_footer
    %s18 = sadd.s32 1, %s14
  $region7: #{tpu_custom_call.1} parent=0 // loop_footer_branch
    %13 = sbr.rel target = $region3
  $region8: #{tpu_custom_call.1} parent=0 // loop_exit
    _

</llo_original>
